<compile_context>
chip_gen: v5e
topology: v5e:2x2
jax: 0.10.0
libtpu: 0.0.40
codegen_flags: <defaults>
</compile_context>

<pallas_src>
import math

import jax
import jax.numpy as jnp
from jax.experimental import pallas as pl
from jax.experimental.pallas import tpu as pltpu


def _layer_scale_kernel(x_ref, g_ref, o_ref):
    # x_ref: (tile_rows, cols) VMEM tile; g_ref: (1, cols) VMEM tile.
    # Single VPU multiply with row broadcast; cast only if output dtype differs.
    o_ref[...] = (x_ref[...] * g_ref[...]).astype(o_ref.dtype)


def _vmem_budget_bytes() -> tuple[int, int]:
    """Per-generation (tile_budget_bytes, vmem_limit_bytes).

    tile_budget bounds 2x (double-buffered) * (input-tile + output-tile) bytes.
    """
    cap = 64 << 20  # conservative default: v7x per-TC physical VMEM
    try:
        info = pltpu.get_tpu_info()
        cap = int(getattr(info, "vmem_capacity_bytes", cap))
    except Exception:
        pass
    # Leave headroom for compiler scratch / semaphores; never ask for > 96 MiB.
    vmem_limit = min((cap * 3) // 4, 96 << 20)      # 48 MiB on v7x, 96 MiB on v5e/v6e
    tile_budget = max(vmem_limit - (4 << 20), 8 << 20)
    return tile_budget, vmem_limit


def _dimension_semantics():
    """CORE_PARALLEL on multi-TensorCore chips (v7x), plain parallel otherwise."""
    kind = ""
    try:
        kind = jax.devices()[0].device_kind.lower()
    except Exception:
        pass
    if "v7" in kind:
        return (pltpu.CORE_PARALLEL,)
    return ("parallel",)


def _pick_tile_rows(n_rows: int, n_cols: int, in_itemsize: int,
                    out_itemsize: int, tile_budget: int) -> int:
    """Largest sublane-aligned row tile whose double-buffered in+out fits."""
    per_row = n_cols * (in_itemsize + out_itemsize)
    tr = max(1, tile_budget // (2 * max(per_row, 1)))
    if tr >= n_rows:
        return n_rows  # full-extent block along rows is always legal
    # Native sublane packing: 8 rows for 4-byte, 16 for 2-byte, 32 for 1-byte.
    align = max(8, 32 // max(min(in_itemsize, out_itemsize), 1))
    return max(align, (tr // align) * align)


def layer_scale(x: jax.Array, lambda1: jax.Array, *,
                strict_promotion: bool = False) -> jax.Array:
    """Applies LayerScale: y = x * lambda1 (broadcast over last dim)."""
    orig_shape = x.shape
    dim = orig_shape[-1]
    assert lambda1.shape == (dim,)

    if strict_promotion:
        # Exact PyTorch type promotion (e.g. bf16 x * f32 lambda1 -> f32 y).
        out_dtype = jnp.result_type(x.dtype, lambda1.dtype)
    else:
        # Default: keep activation dtype (halves write traffic for bf16 x).
        out_dtype = x.dtype
    gamma = lambda1.astype(out_dtype)

    total = x.size
    # Lane-dense 2-D presentation of the data (last dim multiple of 128 when possible).
    if dim % 128 == 0:
        x2d = x.reshape(-1, dim)
        g2d = gamma.reshape(1, dim)
    else:
        packed = math.lcm(dim, 128)
        if packed <= 1024 and total % packed == 0:
            # Pack several feature vectors per lane-dense row; tile gamma to match.
            x2d = x.reshape(-1, packed)
            g2d = jnp.tile(gamma, packed // dim).reshape(1, packed)
        else:
            # Fallback: full-width last dim (correct; may use masked stores).
            x2d = x.reshape(-1, dim)
            g2d = gamma.reshape(1, dim)

    n_rows, n_cols = x2d.shape
    tile_budget, vmem_limit = _vmem_budget_bytes()
    tile_rows = _pick_tile_rows(
        n_rows, n_cols,
        jnp.dtype(x.dtype).itemsize, jnp.dtype(out_dtype).itemsize,
        tile_budget)
    grid = (pl.cdiv(n_rows, tile_rows),)

    out = pl.pallas_call(
        _layer_scale_kernel,
        out_shape=jax.ShapeDtypeStruct((n_rows, n_cols), out_dtype),
        grid_spec=pltpu.PrefetchScalarGridSpec(
            num_scalar_prefetch=0,
            grid=grid,
            in_specs=[
                pl.BlockSpec((tile_rows, n_cols), lambda i: (i, 0)),
                # Constant block index -> gamma is fetched once and kept in VMEM.
                pl.BlockSpec((1, n_cols), lambda i: (0, 0)),
            ],
            out_specs=pl.BlockSpec((tile_rows, n_cols), lambda i: (i, 0)),
        ),
        compiler_params=pltpu.CompilerParams(
            dimension_semantics=_dimension_semantics(),
            vmem_limit_bytes=vmem_limit,
        ),
    )(x2d, g2d)

    return out.reshape(orig_shape)


class LayerScaleJax:
    """Deterministic parameter setup mirroring the PyTorch module __init__."""

    def __init__(self, dim: int, init_values: float = 1e-5, dtype=jnp.float32):
        # nn.Parameter(init_values * torch.ones(dim))
        self.lambda1 = init_values * jnp.ones((dim,), dtype=dtype)

    def __call__(self, x: jax.Array) -> jax.Array:
        # TODO(synk): PyTorch's `inplace=True` (x.mul_) has no JAX equivalent
        # (immutable arrays); out-of-place multiply is numerically identical.
        return layer_scale(x, self.lambda1)


if __name__ == "__main__":
    key = jax.random.PRNGKey(0)
    batch, seq, dim = 2, 8, 32
    x = jax.random.normal(key, (batch, seq, dim), dtype=jnp.float32)

    module = LayerScaleJax(dim, init_values=1e-5)
    y = jax.block_until_ready(module(x))

    ref = x * module.lambda1
    assert y.shape == x.shape and y.dtype == ref.dtype
    assert jnp.allclose(y, ref, atol=1e-6, rtol=1e-6)

    # DINOv2-like shape: lane-aligned dim, ragged row count (boundary blocks).
    x2 = jax.random.normal(jax.random.PRNGKey(1), (3, 197, 384), dtype=jnp.float32)
    m2 = LayerScaleJax(384, init_values=1e-5)
    y2 = jax.block_until_ready(m2(x2))
    assert jnp.allclose(y2, x2 * m2.lambda1, atol=1e-6, rtol=1e-6)

    # bf16 activations with f32 lambda1: default path keeps bf16 output
    # (half the write traffic vs strict promotion).
    x3 = jax.random.normal(jax.random.PRNGKey(2), (2, 197, 384)).astype(jnp.bfloat16)
    m3 = LayerScaleJax(384, init_values=1e-5)
    y3 = jax.block_until_ready(m3(x3))
    ref3 = x3 * m3.lambda1.astype(jnp.bfloat16)
    assert y3.dtype == jnp.bfloat16
    assert jnp.allclose(y3.astype(jnp.float32), ref3.astype(jnp.float32),
                        atol=1e-2, rtol=1e-2)

    print("KERNEL_OK")
</pallas_src>

<mosaic_0001>
module attributes {stable_mosaic.version = 11 : i64} {
  func.func @_layer_scale_kernel(%arg0: i32, %arg1: memref<4x128xf32, #tpu.memory_space<vmem>>, %arg2: memref<1x128xf32, #tpu.memory_space<vmem>>, %arg3: memref<4x128xf32, #tpu.memory_space<vmem>>) attributes {dimension_semantics = [#tpu.dimension_semantics<parallel>], iteration_bounds = array<i64: 1>, scalar_prefetch = 0 : i64, scratch_operands = 0 : i64, tpu.core_type = #tpu.core_type<tc>, window_params = [{transform_indices = @transform_0, window_bounds = array<i64: 4, 128>}, {pipeline_mode = #tpu.pipeline_mode<synchronous>, transform_indices = @transform_1, window_bounds = array<i64: 1, 128>}, {transform_indices = @transform_2, window_bounds = array<i64: 4, 128>}]} {
    %c0 = arith.constant 0 : index
    %c0_0 = arith.constant 0 : index
    %0 = vector.load %arg1[%c0, %c0_0] : memref<4x128xf32, #tpu.memory_space<vmem>>, vector<4x128xf32>
    %c0_1 = arith.constant 0 : index
    %c0_2 = arith.constant 0 : index
    %1 = vector.load %arg2[%c0_1, %c0_2] : memref<1x128xf32, #tpu.memory_space<vmem>>, vector<1x128xf32>
    %2 = vector.broadcast %1 : vector<1x128xf32> to vector<4x128xf32>
    %3 = arith.mulf %0, %2 : vector<4x128xf32>
    %c0_3 = arith.constant 0 : index
    %c0_4 = arith.constant 0 : index
    %4 = vector.load %arg3[%c0_3, %c0_4] : memref<4x128xf32, #tpu.memory_space<vmem>>, vector<4x128xf32>
    tpu.vector_store %arg3[%c0_3, %c0_4], %3 {strides = array<i32>} : memref<4x128xf32, #tpu.memory_space<vmem>>, vector<4x128xf32>,
    return
  }
  func.func @transform_0(%arg0: i32) -> (i32, i32) {
    %c0_i32 = arith.constant 0 : i32
    %c0_i32_0 = arith.constant 0 : i32
    return %arg0, %c0_i32 : i32, i32
  }
  func.func @transform_1(%arg0: i32) -> (i32, i32) {
    %c0_i32 = arith.constant 0 : i32
    %c0_i32_0 = arith.constant 0 : i32
    %c0_i32_1 = arith.constant 0 : i32
    return %c0_i32, %c0_i32_0 : i32, i32
  }
  func.func @transform_2(%arg0: i32) -> (i32, i32) {
    %c0_i32 = arith.constant 0 : i32
    %c0_i32_0 = arith.constant 0 : i32
    return %arg0, %c0_i32 : i32, i32
  }
}

</mosaic_0001>

<llo_original>
// kernel: tpu_custom_call.1
$region0: #{tpu_custom_call.1}
  #allocation0 [shape = 'u32[]', space=smem, size = 0x4, offset = 0x4, fixed_abs, tag = 'smem constant byte address 0x4 - core index']
  #allocation1 [shape = 'u32[72,128]{1,0:T(1,128)}', space=vmem, size = 0x9000, scoped, tag = 'internal scratch']
  %s0 = inlined_call_operand.hbm [shape: f32[4,128], index: 0, kind: input, shape index: {}]
  %s1 = inlined_call_operand.hbm [shape: f32[1,128], index: 1, kind: input, shape index: {}]
  %s2 = inlined_call_operand.hbm [shape: f32[4,128], index: 2, kind: output, shape index: {}]
  %s3 = sld [smem:[#allocation0]]
  $region26: #{tpu_custom_call.1} parent=0
    _
  %s5 = ssub.s32 1, %s3
  %s6 = scalar_select 0, %s5, %s3
  $region1: #{tpu_custom_call.1} parent=0
    #allocation2 [shape = 'u8[2048]{0}', space=vmem, size = 0x800, scoped, tag = 'input window, operand 0, single buffered']
    #allocation3 [shape = 's32[1]{0}', space=sflag, size = 0x4, scoped, tag = 'scoped memory for tpu_custom_call.1']
    #allocation4 [shape = 's32[1]{0}', space=sflag, size = 0x4, scoped, tag = 'scoped memory for tpu_custom_call.1']
    #allocation5 [shape = 'u8[512]{0}', space=vmem, size = 0x400, scoped, tag = 'input window, operand 1, single buffered']
    #allocation6 [shape = 's32[1]{0}', space=sflag, size = 0x4, scoped, tag = 'scoped memory for tpu_custom_call.1']
    #allocation7 [shape = 'u8[2048]{0}', space=vmem, size = 0x800, scoped, tag = 'output window, operand 0, single buffered']
    %7 = vsyncpa [#allocation3], 0
    %8 = vsyncpa [#allocation6], 0
    %9 = vsyncpa [#allocation4], 0
    // Predicated region
    $region2: #{tpu_custom_call.1} parent=1 // pred_check
      _
    $region3: #{tpu_custom_call.1} parent=1 // pred_check_branch
      %11 = sbr.rel (0) target = $region5
    $region4: #{tpu_custom_call.1} parent=1 // pred_region
      %13 = vsyncadd [#allocation3], 0
      %s15 = sshll.u32 %s0, 4
      %s16 = int_to_ptr.hbm [resolvable:$true] %s15
      %s17 = sshll.u32 [#allocation2], 4
      %s18 = int_to_ptr.vmem [resolvable:$true] %s17
      %20 = dma.hbm_to_vmem [thread:$0]  %s16, 64, %s18, [#allocation3]
    $region5: #{tpu_custom_call.1} parent=1 // pred_fallthru
      _
    // Predicated region
    $region6: #{tpu_custom_call.1} parent=1 // pred_check
      _
    $region7: #{tpu_custom_call.1} parent=1 // pred_check_branch
      %22 = sbr.rel (0) target = $region9
    $region8: #{tpu_custom_call.1} parent=1 // pred_region
      %24 = vsyncadd [#allocation6], 0
      %s26 = sshll.u32 %s1, 4
      %s27 = int_to_ptr.hbm [resolvable:$true] %s26
      %s28 = sshll.u32 [#allocation5], 4
      %s29 = int_to_ptr.vmem [resolvable:$true] %s28
      %31 = dma.hbm_to_vmem [thread:$0]  %s27, 16, %s29, [#allocation6]
    $region9: #{tpu_custom_call.1} parent=1 // pred_fallthru
      _
    // Predicated region
    $region10: #{tpu_custom_call.1} parent=1 // pred_check
      _
    $region11: #{tpu_custom_call.1} parent=1 // pred_check_branch
      %33 = sbr.rel (0) target = $region13
    $region12: #{tpu_custom_call.1} parent=1 // pred_region
      %35 = dma.done [#allocation3], 64
    $region13: #{tpu_custom_call.1} parent=1 // pred_fallthru
      _
    // Predicated region
    $region14: #{tpu_custom_call.1} parent=1 // pred_check
      _
    $region15: #{tpu_custom_call.1} parent=1 // pred_check_branch
      %37 = sbr.rel (0) target = $region17
    $region16: #{tpu_custom_call.1} parent=1 // pred_region
      %39 = dma.done [#allocation6], 16
    $region17: #{tpu_custom_call.1} parent=1 // pred_fallthru
      _
    %v40 = vld [vmem:[#allocation2] sm:$0xf]
    %v41 = vld [vmem:[#allocation5] sm:$0x1]
    %v43 = vperm.slane %v41, 0
    %v45 = vmul.f32 %v40, %v43
    %46 = vst [vmem:[#allocation7] sm:$0xf] %v45
    // Predicated region
    $region18: #{tpu_custom_call.1} parent=1 // pred_check
      _
    $region19: #{tpu_custom_call.1} parent=1 // pred_check_branch
      %48 = sbr.rel (0) target = $region21
    $region20: #{tpu_custom_call.1} parent=1 // pred_region
      %50 = vsyncadd [#allocation4], 0
      %s52 = sshll.u32 [#allocation7], 4
      %s53 = int_to_ptr.vmem [resolvable:$true] %s52
      %s54 = sshll.u32 %s2, 4
      %s55 = int_to_ptr.hbm [resolvable:$true] %s54
      %57 = dma.vmem_to_hbm [thread:$0]  %s53, 64, %s55, [#allocation4]
    $region21: #{tpu_custom_call.1} parent=1 // pred_fallthru
      _
    // Predicated region
    $region22: #{tpu_custom_call.1} parent=1 // pred_check
      _
    $region23: #{tpu_custom_call.1} parent=1 // pred_check_branch
      %59 = sbr.rel (0) target = $region25
    $region24: #{tpu_custom_call.1} parent=1 // pred_region
      %61 = dma.done [#allocation4], 64
    $region25: #{tpu_custom_call.1} parent=1 // pred_fallthru
      _
    %62 = vsyncpa [#allocation3], 1
    %63 = vsyncpa [#allocation6], 1
    %64 = vsyncpa [#allocation4], 1

</llo_original>
